<compile_context>
chip_gen: v7x
topology: tpu7x:2x2x1
jax: 0.10.0
libtpu: 0.0.40
codegen_flags: <defaults>
</compile_context>

<pallas_src>
import functools

import jax
import jax.numpy as jnp
from jax import lax
from jax.experimental import pallas as pl
from jax.experimental.pallas import tpu as pltpu

LN_EPS = 1e-5


def _round_up(x, m):
    return (x + m - 1) // m * m


def _vmem_capacity_bytes():
    """Per-core VMEM capacity; conservative fallback if the query is unavailable."""
    try:
        return int(pltpu.get_tpu_info().vmem_capacity_bytes)
    except Exception:
        return 64 << 20  # assume the smallest (v7x per-TensorCore)


def _layernorm_affine(x_f32, gamma, beta, inv_d):
    """Single-pass LayerNorm over the last dim + affine (f32 statistics)."""
    s1 = jnp.sum(x_f32, axis=-1, keepdims=True)
    s2 = jnp.sum(x_f32 * x_f32, axis=-1, keepdims=True)
    mean = s1 * inv_d
    var = jnp.maximum(s2 * inv_d - mean * mean, 0.0)   # clamp cancellation
    x_hat = (x_f32 - mean) * lax.rsqrt(var + LN_EPS)
    return x_hat * gamma + beta


def _prenorm_kernel_resident(x_ref, gamma_ref, beta_ref, w_ref, bias_ref, o_ref,
                             *, inv_d, matmul_dtype):
    """1-D grid over row blocks; full (bf16) weight is VMEM-resident."""
    y = _layernorm_affine(x_ref[...].astype(jnp.float32),
                          gamma_ref[...], beta_ref[...], inv_d)
    out = jnp.dot(y.astype(matmul_dtype), w_ref[...],
                  preferred_element_type=jnp.float32)
    o_ref[...] = (out + bias_ref[...]).astype(o_ref.dtype)


def _prenorm_kernel_tiled(x_ref, gamma_ref, beta_ref, w_ref, bias_ref, o_ref,
                          y_scratch, *, inv_d, matmul_dtype):
    """2-D grid (rows, H-tiles); LN result cached in VMEM scratch at j == 0."""
    @pl.when(pl.program_id(1) == 0)
    def _():
        y = _layernorm_affine(x_ref[...].astype(jnp.float32),
                              gamma_ref[...], beta_ref[...], inv_d)
        y_scratch[...] = y.astype(matmul_dtype)

    out = jnp.dot(y_scratch[...], w_ref[...], preferred_element_type=jnp.float32)
    o_ref[...] = (out + bias_ref[...]).astype(o_ref.dtype)


def prenorm_linear(x, gamma, beta, w, bias, *, row_tile=None, col_tile=512,
                   matmul_dtype=jnp.bfloat16, max_resident_weight_bytes=8 << 20):
    """x: (B, N, D) -> Linear(LayerNorm(x)) with Linear(D, H). Returns (B, N, H)."""
    B, N, D = x.shape
    H = w.shape[1]
    R = B * N

    vmem_cap = _vmem_capacity_bytes()
    # Keep the scoped-VMEM request well below the physical per-core capacity
    # (critical on v7x where the total is only 64 MiB).
    vmem_budget = max(32 << 20, int(0.70 * vmem_cap))

    if row_tile is None:
        # 128 MiB VMEM parts (v5e/v6e) comfortably take 512-row blocks.
        row_tile = 512 if vmem_cap >= (96 << 20) else 256

    # Row tiling: no host-side pad; if R does not divide, Pallas masks the
    # ragged last block (rows are independent, edge garbage is never written).
    row_t = R if R <= row_tile else max(8, (row_tile // 8) * 8)
    n_row_blocks = pl.cdiv(R, row_t)

    # Host prep: flatten rows (free reshape), pre-cast weight to the MXU dtype.
    x2d = x.reshape(R, D)
    gamma2d = gamma.reshape(1, D).astype(jnp.float32)
    beta2d = beta.reshape(1, D).astype(jnp.float32)
    bias2d = bias.reshape(1, H).astype(jnp.float32)
    w_mx = w.astype(matmul_dtype)

    xb = jnp.dtype(x.dtype).itemsize
    wb = jnp.dtype(matmul_dtype).itemsize
    ob = jnp.dtype(x.dtype).itemsize
    small = 2 * ((2 * D + H) * 4) + (1 << 20)

    kernel_kwargs = dict(inv_d=1.0 / D, matmul_dtype=matmul_dtype)

    # Prefer the weight-resident (single column block) path when it fits.
    w_bytes = D * H * wb
    resident = w_bytes <= max_resident_weight_bytes
    if resident:
        need = 2 * (row_t * D * xb + row_t * H * ob) + 2 * w_bytes + small
        resident = need <= vmem_budget

    if not resident:
        col_t = _round_up(min(col_tile, _round_up(H, 128)), 128)
        need = (2 * (row_t * D * xb) + 2 * (D * col_t * wb)
                + 2 * (row_t * col_t * ob) + row_t * D * wb + small)

    vmem_limit = int(min(max(need + (8 << 20), 32 << 20), vmem_budget))

    w_streams = 1 if resident else n_row_blocks
    cost = pl.CostEstimate(
        flops=int(2 * R * D * H + 10 * R * D),
        transcendentals=int(R),                          # one rsqrt per row
        bytes_accessed=int(xb * R * D + ob * R * H
                           + wb * D * H * w_streams + 4 * (2 * D + H)),
    )

    if resident:
        out2d = pl.pallas_call(
            functools.partial(_prenorm_kernel_resident, **kernel_kwargs),
            out_shape=jax.ShapeDtypeStruct((R, H), x.dtype),
            grid_spec=pltpu.PrefetchScalarGridSpec(
                num_scalar_prefetch=0,
                grid=(n_row_blocks,),
                in_specs=[
                    pl.BlockSpec((row_t, D), lambda i: (i, 0)),   # x rows
                    pl.BlockSpec((1, D), lambda i: (0, 0)),       # LN gamma
                    pl.BlockSpec((1, D), lambda i: (0, 0)),       # LN beta
                    pl.BlockSpec((D, H), lambda i: (0, 0)),       # weight (VMEM-resident)
                    pl.BlockSpec((1, H), lambda i: (0, 0)),       # bias
                ],
                out_specs=pl.BlockSpec((row_t, H), lambda i: (i, 0)),
            ),
            compiler_params=pltpu.CompilerParams(
                dimension_semantics=("parallel",),
                vmem_limit_bytes=vmem_limit,
            ),
            cost_estimate=cost,
        )(x2d, gamma2d, beta2d, w_mx, bias2d)
    else:
        out2d = pl.pallas_call(
            functools.partial(_prenorm_kernel_tiled, **kernel_kwargs),
            out_shape=jax.ShapeDtypeStruct((R, H), x.dtype),
            grid_spec=pltpu.PrefetchScalarGridSpec(
                num_scalar_prefetch=0,
                grid=(n_row_blocks, pl.cdiv(H, col_t)),
                in_specs=[
                    pl.BlockSpec((row_t, D), lambda i, j: (i, 0)),    # x rows (fetched once per i)
                    pl.BlockSpec((1, D), lambda i, j: (0, 0)),        # LN gamma
                    pl.BlockSpec((1, D), lambda i, j: (0, 0)),        # LN beta
                    pl.BlockSpec((D, col_t), lambda i, j: (0, j)),    # weight H-tile (bf16)
                    pl.BlockSpec((1, col_t), lambda i, j: (0, j)),    # bias H-tile
                ],
                out_specs=pl.BlockSpec((row_t, col_t), lambda i, j: (i, j)),
                scratch_shapes=[pltpu.VMEM((row_t, D), matmul_dtype)],  # cached LN(x)
            ),
            compiler_params=pltpu.CompilerParams(
                dimension_semantics=("parallel", "arbitrary"),
                vmem_limit_bytes=vmem_limit,
            ),
            cost_estimate=cost,
        )(x2d, gamma2d, beta2d, w_mx, bias2d)

    return out2d.reshape(B, N, H)


def prenorm_linear_ref(x, gamma, beta, w, bias, matmul_dtype=jnp.bfloat16):
    """Pure-JAX reference mirroring fn(nn.LayerNorm(dim)(x)) with bf16 MXU inputs."""
    xf = x.astype(jnp.float32)
    mean = jnp.mean(xf, axis=-1, keepdims=True)
    var = jnp.mean((xf - mean) ** 2, axis=-1, keepdims=True)
    x_hat = (xf - mean) * lax.rsqrt(var + LN_EPS)
    y = x_hat * gamma + beta
    yq = y.astype(matmul_dtype).astype(jnp.float32)
    wq = w.astype(matmul_dtype).astype(jnp.float32)
    return (yq @ wq + bias).astype(x.dtype)


# TODO(synk): PreNorm.fn is an arbitrary callable in the PyTorch module; only the
# canonical MobileViT-v2 case fn = nn.Linear(dim, hidden) is fused here.

if __name__ == "__main__":
    key = jax.random.PRNGKey(0)
    k_x, k_w, k_x2, k_w2 = jax.random.split(key, 4)

    # --- main case: weight-resident path at small shapes -----------------------
    B, N, D, H = 2, 8, 32, 32
    x = jax.random.normal(k_x, (B, N, D), dtype=jnp.float32)
    gamma = jnp.ones((D,), dtype=jnp.float32)   # PyTorch LayerNorm defaults
    beta = jnp.zeros((D,), dtype=jnp.float32)
    w = jax.random.normal(k_w, (D, H), dtype=jnp.float32) * 0.02
    bias = jnp.zeros((H,), dtype=jnp.float32)

    out = jax.block_until_ready(prenorm_linear(x, gamma, beta, w, bias))
    ref = prenorm_linear_ref(x, gamma, beta, w, bias)
    assert out.shape == (B, N, H)
    assert jnp.allclose(out, ref, atol=2e-3, rtol=2e-3), "mismatch (resident path)"

    # --- fallback column-tiled path (forced), ragged rows / cols, LN caching ---
    B2, N2, D2, H2 = 2, 40, 48, 200
    x2 = jax.random.normal(k_x2, (B2, N2, D2), dtype=jnp.float32)
    gamma2 = 1.0 + 0.1 * jax.random.normal(jax.random.PRNGKey(1), (D2,), jnp.float32)
    beta2 = 0.1 * jax.random.normal(jax.random.PRNGKey(2), (D2,), jnp.float32)
    w2 = jax.random.normal(k_w2, (D2, H2), dtype=jnp.float32) * 0.05
    bias2 = 0.1 * jax.random.normal(jax.random.PRNGKey(3), (H2,), jnp.float32)

    out2 = jax.block_until_ready(
        prenorm_linear(x2, gamma2, beta2, w2, bias2,
                       row_tile=32, col_tile=128, max_resident_weight_bytes=0))
    ref2 = prenorm_linear_ref(x2, gamma2, beta2, w2, bias2)
    assert out2.shape == (B2, N2, H2)
    assert jnp.allclose(out2, ref2, atol=5e-3, rtol=5e-3), "mismatch (tiled path)"

    print("KERNEL_OK")
</pallas_src>

<mosaic_0001>
module attributes {stable_mosaic.version = 11 : i64} {
  func.func @_prenorm_kernel_resident(%arg0: i32, %arg1: memref<16x32xf32, #tpu.memory_space<vmem>>, %arg2: memref<1x32xf32, #tpu.memory_space<vmem>>, %arg3: memref<1x32xf32, #tpu.memory_space<vmem>>, %arg4: memref<32x32xbf16, #tpu.memory_space<vmem>>, %arg5: memref<1x32xf32, #tpu.memory_space<vmem>>, %arg6: memref<16x32xf32, #tpu.memory_space<vmem>>) attributes {dimension_semantics = [#tpu.dimension_semantics<parallel>], iteration_bounds = array<i64: 1>, scalar_prefetch = 0 : i64, scratch_operands = 0 : i64, tpu.core_type = #tpu.core_type<tc>, window_params = [{transform_indices = @transform_0, window_bounds = array<i64: 16, 32>}, {pipeline_mode = #tpu.pipeline_mode<synchronous>, transform_indices = @transform_1, window_bounds = array<i64: 1, 32>}, {pipeline_mode = #tpu.pipeline_mode<synchronous>, transform_indices = @transform_2, window_bounds = array<i64: 1, 32>}, {pipeline_mode = #tpu.pipeline_mode<synchronous>, transform_indices = @transform_3, window_bounds = array<i64: 32, 32>}, {pipeline_mode = #tpu.pipeline_mode<synchronous>, transform_indices = @transform_4, window_bounds = array<i64: 1, 32>}, {transform_indices = @transform_5, window_bounds = array<i64: 16, 32>}]} {
    %c0 = arith.constant 0 : index
    %c0_0 = arith.constant 0 : index
    %0 = vector.load %arg1[%c0, %c0_0] : memref<16x32xf32, #tpu.memory_space<vmem>>, vector<16x32xf32>
    %c0_1 = arith.constant 0 : index
    %c0_2 = arith.constant 0 : index
    %1 = vector.load %arg2[%c0_1, %c0_2] : memref<1x32xf32, #tpu.memory_space<vmem>>, vector<1x32xf32>
    %c0_3 = arith.constant 0 : index
    %c0_4 = arith.constant 0 : index
    %2 = vector.load %arg3[%c0_3, %c0_4] : memref<1x32xf32, #tpu.memory_space<vmem>>, vector<1x32xf32>
    %cst = arith.constant dense<0.000000e+00> : vector<16xf32>
    %3 = vector.multi_reduction <add>, %0, %cst [1] : vector<16x32xf32> to vector<16xf32>
    %4 = vector.shape_cast %3 : vector<16xf32> to vector<16x1xf32>
    %5 = arith.mulf %0, %0 : vector<16x32xf32>
    %cst_5 = arith.constant dense<0.000000e+00> : vector<16xf32>
    %6 = vector.multi_reduction <add>, %5, %cst_5 [1] : vector<16x32xf32> to vector<16xf32>
    %7 = vector.shape_cast %6 : vector<16xf32> to vector<16x1xf32>
    %cst_6 = arith.constant 3.125000e-02 : f32
    %8 = vector.broadcast %cst_6 : f32 to vector<16x1xf32>
    %9 = arith.mulf %4, %8 : vector<16x1xf32>
    %cst_7 = arith.constant 3.125000e-02 : f32
    %10 = vector.broadcast %cst_7 : f32 to vector<16x1xf32>
    %11 = arith.mulf %7, %10 : vector<16x1xf32>
    %12 = arith.mulf %9, %9 : vector<16x1xf32>
    %13 = arith.subf %11, %12 : vector<16x1xf32>
    %cst_8 = arith.constant 0.000000e+00 : f32
    %14 = vector.broadcast %cst_8 : f32 to vector<16x1xf32>
    %15 = arith.maximumf %13, %14 : vector<16x1xf32>
    %16 = vector.broadcast %9 : vector<16x1xf32> to vector<16x32xf32>
    %17 = arith.subf %0, %16 : vector<16x32xf32>
    %cst_9 = arith.constant 9.99999974E-6 : f32
    %18 = vector.broadcast %cst_9 : f32 to vector<16x1xf32>
    %19 = arith.addf %15, %18 : vector<16x1xf32>
    %20 = math.rsqrt %19 : vector<16x1xf32>
    %21 = vector.broadcast %20 : vector<16x1xf32> to vector<16x32xf32>
    %22 = arith.mulf %17, %21 : vector<16x32xf32>
    %23 = vector.broadcast %1 : vector<1x32xf32> to vector<16x32xf32>
    %24 = arith.mulf %22, %23 : vector<16x32xf32>
    %25 = vector.broadcast %2 : vector<1x32xf32> to vector<16x32xf32>
    %26 = arith.addf %24, %25 : vector<16x32xf32>
    %27 = arith.truncf %26 : vector<16x32xf32> to vector<16x32xbf16>
    %c0_10 = arith.constant 0 : index
    %c0_11 = arith.constant 0 : index
    %28 = vector.load %arg4[%c0_10, %c0_11] : memref<32x32xbf16, #tpu.memory_space<vmem>>, vector<32x32xbf16>
    %cst_12 = arith.constant dense<0.000000e+00> : vector<16x32xf32>
    %29 = tpu.matmul %27, %28, %cst_12 {dimension_numbers = #tpu.dot_dimension_numbers<[1], [0], [0], [1], [0, 0, 1, 1], [], []>} : vector<16x32xbf16>, vector<32x32xbf16>, vector<16x32xf32> -> vector<16x32xf32>
    %c0_13 = arith.constant 0 : index
    %c0_14 = arith.constant 0 : index
    %30 = vector.load %arg5[%c0_13, %c0_14] : memref<1x32xf32, #tpu.memory_space<vmem>>, vector<1x32xf32>
    %31 = vector.broadcast %30 : vector<1x32xf32> to vector<16x32xf32>
    %32 = arith.addf %29, %31 : vector<16x32xf32>
    %c0_15 = arith.constant 0 : index
    %c0_16 = arith.constant 0 : index
    %33 = vector.load %arg6[%c0_15, %c0_16] : memref<16x32xf32, #tpu.memory_space<vmem>>, vector<16x32xf32>
    tpu.vector_store %arg6[%c0_15, %c0_16], %32 {strides = array<i32>} : memref<16x32xf32, #tpu.memory_space<vmem>>, vector<16x32xf32>,
    return
  }
  func.func @transform_0(%arg0: i32) -> (i32, i32) {
    %c0_i32 = arith.constant 0 : i32
    %c0_i32_0 = arith.constant 0 : i32
    return %arg0, %c0_i32 : i32, i32
  }
  func.func @transform_1(%arg0: i32) -> (i32, i32) {
    %c0_i32 = arith.constant 0 : i32
    %c0_i32_0 = arith.constant 0 : i32
    %c0_i32_1 = arith.constant 0 : i32
    return %c0_i32, %c0_i32_0 : i32, i32
  }
  func.func @transform_2(%arg0: i32) -> (i32, i32) {
    %c0_i32 = arith.constant 0 : i32
    %c0_i32_0 = arith.constant 0 : i32
    %c0_i32_1 = arith.constant 0 : i32
    return %c0_i32, %c0_i32_0 : i32, i32
  }
  func.func @transform_3(%arg0: i32) -> (i32, i32) {
    %c0_i32 = arith.constant 0 : i32
    %c0_i32_0 = arith.constant 0 : i32
    %c0_i32_1 = arith.constant 0 : i32
    return %c0_i32, %c0_i32_0 : i32, i32
  }
  func.func @transform_4(%arg0: i32) -> (i32, i32) {
    %c0_i32 = arith.constant 0 : i32
    %c0_i32_0 = arith.constant 0 : i32
    %c0_i32_1 = arith.constant 0 : i32
    return %c0_i32, %c0_i32_0 : i32, i32
  }
  func.func @transform_5(%arg0: i32) -> (i32, i32) {
    %c0_i32 = arith.constant 0 : i32
    %c0_i32_0 = arith.constant 0 : i32
    return %arg0, %c0_i32 : i32, i32
  }
}

</mosaic_0001>

<llo_original>
// kernel: tpu_custom_call.1
$region0: #{tpu_custom_call.1}
  #allocation0 [shape = 'u32[]', space=smem, size = 0x4, offset = 0x4, fixed_abs, tag = 'smem constant byte address 0x4 - core index']
  #allocation1 [shape = 'u32[144,128]{1,0:T(1,128)}', space=vmem, size = 0x12000, scoped, tag = 'internal scratch']
  %s0 = inlined_call_operand.hbm [shape: f32[16,32], index: 0, kind: input, shape index: {}]
  %s1 = inlined_call_operand.vmem [shape: f32[1,32], index: 1, kind: input, shape index: {}]
  %s2 = inlined_call_operand.vmem [shape: f32[1,32], index: 2, kind: input, shape index: {}]
  %s3 = inlined_call_operand.hbm [shape: bf16[32,32], index: 3, kind: input, shape index: {}]
  %s4 = inlined_call_operand.vmem [shape: f32[1,32], index: 4, kind: input, shape index: {}]
  %s5 = inlined_call_operand.hbm [shape: f32[16,32], index: 5, kind: output, shape index: {}]
  %s6 = sld [smem:[#allocation0]]
  $region38: #{tpu_custom_call.1} parent=0
    _
  %s8 = ssub.s32 1, %s6
  %s9 = scalar_select 0, %s8, %s6
  $region1: #{tpu_custom_call.1} parent=0
    #allocation2 [shape = 'u8[8192]{0}', space=vmem, size = 0x2000, scoped, tag = 'input window, operand 0, single buffered']
    #allocation3 [shape = 's32[1]{0}', space=sflag, size = 0x4, scoped, tag = 'scoped memory for tpu_custom_call.1']
    #allocation4 [shape = 's32[1]{0}', space=sflag, size = 0x4, scoped, tag = 'scoped memory for tpu_custom_call.1']
    #allocation5 [shape = 'u8[8192]{0}', space=vmem, size = 0x2000, scoped, tag = 'input window, operand 3, single buffered']
    #allocation6 [shape = 's32[1]{0}', space=sflag, size = 0x4, scoped, tag = 'scoped memory for tpu_custom_call.1']
    #allocation7 [shape = 'u8[8192]{0}', space=vmem, size = 0x2000, scoped, tag = 'output window, operand 0, single buffered']
    %10 = vsyncpa [#allocation3], 0
    %11 = vsyncpa [#allocation6], 0
    %12 = vsyncpa [#allocation4], 0
    // Predicated region
    $region2: #{tpu_custom_call.1} parent=1 // pred_check
      _
    $region3: #{tpu_custom_call.1} parent=1 // pred_check_branch
      %14 = sbr.rel (0) target = $region5
    $region4: #{tpu_custom_call.1} parent=1 // pred_region
      %s16 = ssub.s32 256, 256
      %17 = vsyncadd [#allocation3], %s16
      %s18 = sshll.u32 [#allocation2], 4
      %s19 = int_to_ptr.vmem [resolvable:$true] %s18
      %24 = dma.hbm_to_vmem [thread:$0]  %s0, 256, %s19, [#allocation3], 128, 128, 8
    $region5: #{tpu_custom_call.1} parent=1 // pred_fallthru
      _
    // Predicated region
    $region6: #{tpu_custom_call.1} parent=1 // pred_check
      _
    $region7: #{tpu_custom_call.1} parent=1 // pred_check_branch
      %26 = sbr.rel (0) target = $region9
    $region8: #{tpu_custom_call.1} parent=1 // pred_region
      _
    $region9: #{tpu_custom_call.1} parent=1 // pred_fallthru
      _
    // Predicated region
    $region10: #{tpu_custom_call.1} parent=1 // pred_check
      _
    $region11: #{tpu_custom_call.1} parent=1 // pred_check_branch
      %28 = sbr.rel (0) target = $region13
    $region12: #{tpu_custom_call.1} parent=1 // pred_region
      _
    $region13: #{tpu_custom_call.1} parent=1 // pred_fallthru
      _
    // Predicated region
    $region14: #{tpu_custom_call.1} parent=1 // pred_check
      _
    $region15: #{tpu_custom_call.1} parent=1 // pred_check_branch
      %30 = sbr.rel (0) target = $region17
    $region16: #{tpu_custom_call.1} parent=1 // pred_region
      %s32 = ssub.s32 256, 256
      %33 = vsyncadd [#allocation6], %s32
      %s34 = sshll.u32 [#allocation5], 4
      %s35 = int_to_ptr.vmem [resolvable:$true] %s34
      %40 = dma.hbm_to_vmem [thread:$0]  %s3, 256, %s35, [#allocation6], 64, 64, 4
    $region17: #{tpu_custom_call.1} parent=1 // pred_fallthru
      _
    // Predicated region
    $region18: #{tpu_custom_call.1} parent=1 // pred_check
      _
    $region19: #{tpu_custom_call.1} parent=1 // pred_check_branch
      %42 = sbr.rel (0) target = $region21
    $region20: #{tpu_custom_call.1} parent=1 // pred_region
      _
    $region21: #{tpu_custom_call.1} parent=1 // pred_fallthru
      _
    // Predicated region
    $region22: #{tpu_custom_call.1} parent=1 // pred_check
      _
    $region23: #{tpu_custom_call.1} parent=1 // pred_check_branch
      %44 = sbr.rel (0) target = $region25
    $region24: #{tpu_custom_call.1} parent=1 // pred_region
      %45 = dma.done [#allocation3], 256
    $region25: #{tpu_custom_call.1} parent=1 // pred_fallthru
      _
    // Predicated region
    $region26: #{tpu_custom_call.1} parent=1 // pred_check
      _
    $region27: #{tpu_custom_call.1} parent=1 // pred_check_branch
      %47 = sbr.rel (0) target = $region29
    $region28: #{tpu_custom_call.1} parent=1 // pred_region
      %48 = dma.done [#allocation6], 256
    $region29: #{tpu_custom_call.1} parent=1 // pred_fallthru
      _
    %v50 = vld [vmem:[#allocation2] sm:$0xff]
    %v51 = vld [vmem:[#allocation2 + $0x8] sm:$0xff]
    %v52 = vld [vmem:[%s1] sm:$0x1]
    %v53 = vld [vmem:[%s2] sm:$0x1]
    %vm54 = vcmask 261120
    %v55 = vsel %vm54, %v50, 0.0
    %56 = vadd.xlane.f32.xlu0 %v55
    %v57 = vpop.xlane.xlu0 %56
    %v58 = vsel %vm54, %v51, 0.0
    %59 = vadd.xlane.f32.xlu0 %v58
    %v60 = vpop.xlane.xlu0 %59
    %v61 = vmul.f32 %v50, %v50
    %v62 = vmul.f32 %v51, %v51
    %v63 = vsel %vm54, %v61, 0.0
    %64 = vadd.xlane.f32.xlu0 %v63
    %v65 = vpop.xlane.xlu0 %64
    %v66 = vsel %vm54, %v62, 0.0
    %67 = vadd.xlane.f32.xlu0 %v66
    %v68 = vpop.xlane.xlu0 %67
    %v69 = vmul.f32 %v57, 0.03125
    %v70 = vmul.f32 %v60, 0.03125
    %v71 = vmul.f32 %v65, 0.03125
    %v72 = vmul.f32 %v68, 0.03125
    %v73 = vmul.f32 %v69, %v69
    %v74 = vmul.f32 %v70, %v70
    %v75 = vsub.f32 %v71, %v73
    %v76 = vsub.f32 %v72, %v74
    %v77 = vmax.f32 %v75, 0.0
    %v78 = vmax.f32 %v76, 0.0
    %v79 = vsub.f32 %v50, %v69
    %v80 = vsub.f32 %v51, %v70
    %v81 = vadd.f32 %v77, 1e-05
    %v82 = vadd.f32 %v78, 1e-05
    %v83 = vrsqrt.pop %v81
    %v84 = vrsqrt.pop %v82
    %v85 = vmul.f32 %v79, %v83
    %v86 = vmul.f32 %v80, %v84
    %v88 = vlaneseq
    %v89 = vshrl.u32 %v88, 7
    %v90 = vsub.s32 0, %v89
    %v91 = vrot.slane %v52, %v90
    %v93 = vmul.f32 %v85, %v91
    %v94 = vmul.f32 %v86, %v91
    %v96 = vlaneseq
    %v97 = vshrl.u32 %v96, 7
    %v98 = vsub.s32 0, %v97
    %v99 = vrot.slane %v53, %v98
    %v101 = vadd.f32 %v93, %v99
    %v102 = vadd.f32 %v94, %v99
    %v103 = vpack.c.bf16 %v102, %v101
    %v104 = vld [vmem:[#allocation5] sm:$0xf]
    %v105 = vld [vmem:[#allocation5 + $0x4] sm:$0xf]
    %v106 = vld [vmem:[#allocation5 + $0x8] sm:$0xf]
    %v107 = vld [vmem:[#allocation5 + $0xc] sm:$0xf]
    %v108 = vld [vmem:[%s4] sm:$0x1]
    %v110 = vlaneseq
    %v111 = vshrl.u32 %v110, 7
    %v112 = vsub.s32 0, %v111
    %v113 = vrot.slane %v108, %v112
    %v119 = vunpack.c.l.b16 %v104
    %v120 = vunpack.c.l.b16 %v105
    %v121 = vunpack.c.l.b16 %v106
    %v122 = vunpack.c.l.b16 %v107
    %v123 = vpack.c.b16 %v120, %v119
    %v124 = vpack.c.b16 %v122, %v121
    %v128 = vsel %vm54, %v103, 0
    %130 = vmatprep.subr.bf16.mxu0 0
    %131 = vmatpush1.bf16.msra.mxu0 %v123
    %132 = vmatprep.subr.bf16.mxu0 0
    %133 = vmatpush1.bf16.msra.mxu0 %v124
    %134 = vmatprep.subr.bf16.mxu0 0
    %135 = vmatpush1.bf16.msra.mxu0 0
    %136 = vmatprep.subr.bf16.mxu0 0
    %137 = vmatpush1.bf16.msra.mxu0 0
    %138 = vmatprep.subr.bf16.mxu0 0
    %139 = vmatpush1.bf16.msra.mxu0 0
    %140 = vmatprep.subr.bf16.mxu0 0
    %141 = vmatpush1.bf16.msra.mxu0 0
    %142 = vmatprep.subr.bf16.mxu0 0
    %143 = vmatpush1.bf16.msra.mxu0 0
    %144 = vmatprep.subr.bf16.mxu0 0
    %145 = vmatpush1.bf16.msra.mxu0 0
    %146 = vmatprep.subr.bf16.mxu0 0
    %147 = vmatpush1.bf16.msra.mxu0 0
    %148 = vmatprep.subr.bf16.mxu0 0
    %149 = vmatpush1.bf16.msra.mxu0 0
    %150 = vmatprep.subr.bf16.mxu0 0
    %151 = vmatpush1.bf16.msra.mxu0 0
    %152 = vmatprep.subr.bf16.mxu0 0
    %153 = vmatpush1.bf16.msra.mxu0 0
    %154 = vmatprep.subr.bf16.mxu0 0
    %155 = vmatpush1.bf16.msra.mxu0 0
    %156 = vmatprep.subr.bf16.mxu0 0
    %157 = vmatpush1.bf16.msra.mxu0 0
    %158 = vmatprep.subr.bf16.mxu0 0
    %159 = vmatpush1.bf16.msra.mxu0 0
    %160 = vmatprep.subr.bf16.mxu0 0
    %161 = vmatpush1.bf16.msra.mxu0 0
    %162 = vmatprep.mubr.bf16.mxu0 0
    %163 = vmatmul.mubr.bf16.gmra.mrb[0].mxu0 %v128
    %v164 = vpop.f32.mrb[0].mxu0
    %v165 = vadd.f32 %v113, %v164
    %v166 = vpop.f32.mrb[0].mxu0
    %v167 = vpop.f32.mrb[0].mxu0
    %v168 = vadd.f32 %v113, %v167
    %v169 = vpop.f32.mrb[0].mxu0
    %170 = vdwg.mxu0
    %171 = vst.msk [vmem:[#allocation7] sm:$0xff] %vm54, %v165
    %172 = vst.msk [vmem:[#allocation7 + $0x8] sm:$0xff] %vm54, %v168
    // Predicated region
    $region30: #{tpu_custom_call.1} parent=1 // pred_check
      _
    $region31: #{tpu_custom_call.1} parent=1 // pred_check_branch
      %174 = sbr.rel (0) target = $region33
    $region32: #{tpu_custom_call.1} parent=1 // pred_region
      %s176 = ssub.s32 256, 256
      %177 = vsyncadd [#allocation4], %s176
      %s178 = sshll.u32 [#allocation7], 4
      %s179 = int_to_ptr.vmem [resolvable:$true] %s178
      %184 = dma.vmem_to_hbm [thread:$0]  %s179, 256, %s5, [#allocation4], 128, 128, 8
    $region33: #{tpu_custom_call.1} parent=1 // pred_fallthru
      _
    // Predicated region
    $region34: #{tpu_custom_call.1} parent=1 // pred_check
      _
    $region35: #{tpu_custom_call.1} parent=1 // pred_check_branch
      %186 = sbr.rel (0) target = $region37
    $region36: #{tpu_custom_call.1} parent=1 // pred_region
      %187 = dma.done [#allocation4], 256
    $region37: #{tpu_custom_call.1} parent=1 // pred_fallthru
      _
    %188 = vsyncpa [#allocation3], 1
    %189 = vsyncpa [#allocation6], 1
    %190 = vsyncpa [#allocation4], 1

</llo_original>
